<compile_context>
chip_gen: v6e
topology: v6e:2x2x1
jax: 0.10.0
libtpu: 0.0.40
codegen_flags: <defaults>
</compile_context>

<pallas_src>
import jax
import jax.numpy as jnp
from jax.experimental import pallas as pl
from jax.experimental.pallas import tpu as pltpu

EPS = 1e-5


def deconv_block_kernel(a_ref, wmat_ref, bconv_ref, gamma_ref, beta_ref,
                        w1_ref, b1_ref, w2t_ref, b2_ref, out_ref):
    # a_ref:   (1, K*K*Cin, OH*OW)  bf16   im2col patches, spatial axis lane-dense
    # wmat:    (Cout, K*K*Cin)      bf16   flattened (spatially flipped) deconv weight
    # bconv/gamma/beta/b2: (Cout, 1) f32
    # w1: (Cout, Chid)  b1: (1, Chid)  w2t: (Cout, Chid) = w2.T   (SE params)
    # out_ref: (1, Cout, OH*OW) f32
    a = a_ref[0]                                                        # (KKC, HW) bf16

    # --- transposed convolution as one lane-dense MXU matmul, f32 accumulate ---
    y = jnp.dot(wmat_ref[...], a, preferred_element_type=jnp.float32)  # (Cout, HW) f32
    y = y + bconv_ref[...]

    # --- GroupNorm(1, C): per-sample stats over (C,H,W) in a single fused pass ---
    cnt = y.shape[0] * y.shape[1]
    s1 = jnp.sum(y)
    s2 = jnp.sum(y * y)
    mean = s1 / cnt
    var = s2 / cnt - mean * mean                                       # biased variance (f32)
    inv_std = jax.lax.rsqrt(var + EPS)
    scale = gamma_ref[...] * inv_std                                   # (Cout, 1)
    shift = beta_ref[...] - mean * scale                               # (Cout, 1)

    # --- normalize + affine + ReLU in one pass ---
    y = jnp.maximum(y * scale + shift, 0.0)

    # --- squeeze-excitation, small FCs kept on the VPU/XLU (no MXU) ---
    s = jnp.mean(y, axis=1, keepdims=True)                             # (Cout, 1) global avg pool
    h = jnp.maximum(
        jnp.sum(s * w1_ref[...], axis=0, keepdims=True) + b1_ref[...], 0.0)   # (1, Chid)
    g = jax.nn.sigmoid(
        jnp.sum(w2t_ref[...] * h, axis=1, keepdims=True) + b2_ref[...])       # (Cout, 1)

    out_ref[0] = (y * g).astype(out_ref.dtype)


def deconv_block_forward(x_nchw, params):
    """x_nchw: (N, Cin, H, W) float32. Returns (N, Cout, 2H, 2W) float32."""
    w_de, b_de, gamma, beta, w1, b1, w2, b2 = params
    N, Cin, H, W = x_nchw.shape
    Cout = w_de.shape[1]
    K = 4
    OH, OW = 2 * H, 2 * W
    OHW = OH * OW
    KKC = K * K * Cin
    Chid = w1.shape[1]

    # ---- glue (plain JAX, NCHW): zero-dilate + pad + im2col with lane-dense spatial axis ----
    x = x_nchw.astype(jnp.bfloat16)
    x_up = jnp.zeros((N, Cin, 2 * H - 1, 2 * W - 1), x.dtype)
    x_up = x_up.at[:, :, ::2, ::2].set(x)                                  # stride-2 dilation
    x_pad = jnp.pad(x_up, ((0, 0), (0, 0), (2, 2), (2, 2)))                # pad = K - 1 - p = 2

    cols = [x_pad[:, :, ky:ky + OH, kx:kx + OW] for ky in range(K) for kx in range(K)]
    patches = jnp.stack(cols, axis=1).reshape(N, KKC, OHW)                 # (N, KKC, HW) bf16

    # ConvTranspose2d weight (Cin, Cout, K, K) -> (Cout, K*K*Cin) conv-tap matrix, spatial flip
    w_flip = w_de[:, :, ::-1, ::-1]                                        # (Cin, Cout, K, K)
    w_mat = jnp.transpose(w_flip, (1, 2, 3, 0)).reshape(Cout, KKC).astype(jnp.bfloat16)

    bconv = b_de.reshape(Cout, 1)
    gamma2 = gamma.reshape(Cout, 1)
    beta2 = beta.reshape(Cout, 1)
    b12 = b1.reshape(1, Chid)
    w2t = w2.T                                                             # (Cout, Chid)
    b22 = b2.reshape(Cout, 1)

    cost = pl.CostEstimate(
        flops=2 * N * OHW * KKC * Cout + 12 * N * OHW * Cout,
        transcendentals=N * (Cout + 1),
        bytes_accessed=(N * KKC * OHW * 2 + KKC * Cout * 2
                        + N * Cout * OHW * 4 + 8 * Cout * 4),
    )

    # ---- Pallas kernel: one grid step per batch sample ----
    out_flat = pl.pallas_call(
        deconv_block_kernel,
        out_shape=jax.ShapeDtypeStruct((N, Cout, OHW), jnp.float32),
        grid=(N,),
        in_specs=[
            pl.BlockSpec((1, KKC, OHW), lambda n: (n, 0, 0)),
            pl.BlockSpec((Cout, KKC), lambda n: (0, 0)),
            pl.BlockSpec((Cout, 1), lambda n: (0, 0)),
            pl.BlockSpec((Cout, 1), lambda n: (0, 0)),
            pl.BlockSpec((Cout, 1), lambda n: (0, 0)),
            pl.BlockSpec((Cout, Chid), lambda n: (0, 0)),
            pl.BlockSpec((1, Chid), lambda n: (0, 0)),
            pl.BlockSpec((Cout, Chid), lambda n: (0, 0)),
            pl.BlockSpec((Cout, 1), lambda n: (0, 0)),
        ],
        out_specs=pl.BlockSpec((1, Cout, OHW), lambda n: (n, 0, 0)),
        compiler_params=pltpu.CompilerParams(dimension_semantics=("parallel",)),
        cost_estimate=cost,
    )(patches, w_mat, bconv, gamma2, beta2, w1, b12, w2t, b22)

    # Output is already channel-major: a pure reshape gives NCHW (no transpose at all).
    return out_flat.reshape(N, Cout, OH, OW)


def reference_forward(x_nchw, params, matmul_dtype=jnp.float32):
    """Pure-JAX reference of the PyTorch forward (NCHW).

    matmul_dtype lets the reference quantize the conv operands exactly like the kernel
    (bf16 operands, f32 accumulation) for a tight apples-to-apples comparison.
    """
    w_de, b_de, gamma, beta, w1, b1, w2, b2 = params
    Cout = w_de.shape[1]
    w_conv = jnp.transpose(w_de, (1, 0, 2, 3))[:, :, ::-1, ::-1]          # (O, I, K, K)
    xq = x_nchw.astype(matmul_dtype).astype(jnp.float32)
    wq = w_conv.astype(matmul_dtype).astype(jnp.float32)
    # ConvTranspose2d(k=4, s=2, p=1) == conv of stride-2-dilated input, pad 2, flipped kernel
    y = jax.lax.conv_general_dilated(
        xq, wq, window_strides=(1, 1), padding=((2, 2), (2, 2)),
        lhs_dilation=(2, 2), dimension_numbers=('NCHW', 'OIHW', 'NCHW'))
    y = y + b_de.reshape(1, Cout, 1, 1)
    mean = jnp.mean(y, axis=(1, 2, 3), keepdims=True)
    var = jnp.var(y, axis=(1, 2, 3), keepdims=True)
    y = (y - mean) / jnp.sqrt(var + EPS)
    y = y * gamma.reshape(1, Cout, 1, 1) + beta.reshape(1, Cout, 1, 1)
    y = jnp.maximum(y, 0.0)
    s = jnp.mean(y, axis=(2, 3))                                          # (N, C)
    h = jnp.maximum(s @ w1 + b1, 0.0)
    g = jax.nn.sigmoid(h @ w2 + b2)
    return y * g[:, :, None, None]


if __name__ == "__main__":
    # Small deterministic instance: in_ch=4, out_ch=8, se_reduction=4, input 2x4x16x16.
    N, Cin, H, W = 2, 4, 16, 16
    Cout, K, red = 8, 4, 4
    Chid = Cout // red

    key = jax.random.PRNGKey(0)
    ks = jax.random.split(key, 8)
    x = jax.random.normal(ks[0], (N, Cin, H, W), jnp.float32)

    w_de = jax.random.normal(ks[1], (Cin, Cout, K, K), jnp.float32) * 0.1   # ConvTranspose2d weight
    b_de = jax.random.normal(ks[2], (Cout,), jnp.float32) * 0.1             # ConvTranspose2d bias
    gamma = 1.0 + 0.1 * jax.random.normal(ks[3], (Cout,), jnp.float32)      # GroupNorm weight
    beta = 0.1 * jax.random.normal(ks[4], (Cout,), jnp.float32)             # GroupNorm bias
    w1 = jax.random.normal(ks[5], (Cout, Chid), jnp.float32) * 0.2          # SE fc1 (applied as s @ w1)
    b1 = jnp.zeros((Chid,), jnp.float32)
    w2 = jax.random.normal(ks[6], (Chid, Cout), jnp.float32) * 0.2          # SE fc2
    b2 = jnp.zeros((Cout,), jnp.float32)

    params = (w_de, b_de, gamma, beta, w1, b1, w2, b2)

    out = jax.block_until_ready(deconv_block_forward(x, params))
    assert out.shape == (N, Cout, 2 * H, 2 * W), out.shape

    # Tight check against a matched-precision (bf16 matmul operands) reference.
    ref_bf16 = jax.block_until_ready(reference_forward(x, params, matmul_dtype=jnp.bfloat16))
    assert jnp.allclose(out, ref_bf16, atol=2e-3, rtol=2e-3), \
        float(jnp.max(jnp.abs(out - ref_bf16)))

    # Loose sanity check against the full-f32 reference (bounds bf16 quantization error).
    ref_f32 = jax.block_until_ready(reference_forward(x, params, matmul_dtype=jnp.float32))
    assert jnp.allclose(out, ref_f32, atol=1e-1, rtol=1e-1), \
        float(jnp.max(jnp.abs(out - ref_f32)))

    print("KERNEL_OK")
</pallas_src>

<mosaic_0001>
module attributes {stable_mosaic.version = 11 : i64} {
  func.func @deconv_block_kernel(%arg0: i32, %arg1: memref<1x64x1024xbf16, #tpu.memory_space<vmem>>, %arg2: memref<8x64xbf16, #tpu.memory_space<vmem>>, %arg3: memref<8x1xf32, #tpu.memory_space<vmem>>, %arg4: memref<8x1xf32, #tpu.memory_space<vmem>>, %arg5: memref<8x1xf32, #tpu.memory_space<vmem>>, %arg6: memref<8x2xf32, #tpu.memory_space<vmem>>, %arg7: memref<1x2xf32, #tpu.memory_space<vmem>>, %arg8: memref<8x2xf32, #tpu.memory_space<vmem>>, %arg9: memref<8x1xf32, #tpu.memory_space<vmem>>, %arg10: memref<1x8x1024xf32, #tpu.memory_space<vmem>>) attributes {dimension_semantics = [#tpu.dimension_semantics<parallel>], iteration_bounds = array<i64: 2>, scalar_prefetch = 0 : i64, scratch_operands = 0 : i64, tpu.core_type = #tpu.core_type<tc>, window_params = [{transform_indices = @transform_0, window_bounds = array<i64: 1, 64, 1024>}, {pipeline_mode = #tpu.pipeline_mode<synchronous>, transform_indices = @transform_1, window_bounds = array<i64: 8, 64>}, {pipeline_mode = #tpu.pipeline_mode<synchronous>, transform_indices = @transform_2, window_bounds = array<i64: 8, 1>}, {pipeline_mode = #tpu.pipeline_mode<synchronous>, transform_indices = @transform_3, window_bounds = array<i64: 8, 1>}, {pipeline_mode = #tpu.pipeline_mode<synchronous>, transform_indices = @transform_4, window_bounds = array<i64: 8, 1>}, {pipeline_mode = #tpu.pipeline_mode<synchronous>, transform_indices = @transform_5, window_bounds = array<i64: 8, 2>}, {pipeline_mode = #tpu.pipeline_mode<synchronous>, transform_indices = @transform_6, window_bounds = array<i64: 1, 2>}, {pipeline_mode = #tpu.pipeline_mode<synchronous>, transform_indices = @transform_7, window_bounds = array<i64: 8, 2>}, {pipeline_mode = #tpu.pipeline_mode<synchronous>, transform_indices = @transform_8, window_bounds = array<i64: 8, 1>}, {transform_indices = @transform_9, window_bounds = array<i64: 1, 8, 1024>}]} {
    %c0 = arith.constant 0 : index
    %c0_0 = arith.constant 0 : index
    %c0_1 = arith.constant 0 : index
    %0 = vector.load %arg1[%c0, %c0_0, %c0_1] : memref<1x64x1024xbf16, #tpu.memory_space<vmem>>, vector<1x64x1024xbf16>
    %1 = vector.shape_cast %0 : vector<1x64x1024xbf16> to vector<64x1024xbf16>
    %c0_2 = arith.constant 0 : index
    %c0_3 = arith.constant 0 : index
    %2 = vector.load %arg2[%c0_2, %c0_3] : memref<8x64xbf16, #tpu.memory_space<vmem>>, vector<8x64xbf16>
    %cst = arith.constant dense<0.000000e+00> : vector<8x1024xf32>
    %3 = tpu.matmul %2, %1, %cst {dimension_numbers = #tpu.dot_dimension_numbers<[1], [0], [0], [1], [0, 0, 1, 1], [], []>} : vector<8x64xbf16>, vector<64x1024xbf16>, vector<8x1024xf32> -> vector<8x1024xf32>
    %c0_4 = arith.constant 0 : index
    %c0_5 = arith.constant 0 : index
    %4 = vector.load %arg3[%c0_4, %c0_5] : memref<8x1xf32, #tpu.memory_space<vmem>>, vector<8x1xf32>
    %5 = vector.broadcast %4 : vector<8x1xf32> to vector<8x1024xf32>
    %6 = arith.addf %3, %5 : vector<8x1024xf32>
    %7 = vector.shape_cast %6 : vector<8x1024xf32> to vector<1x8x1024xf32>
    %cst_6 = arith.constant dense<0.000000e+00> : vector<1xf32>
    %8 = vector.multi_reduction <add>, %7, %cst_6 [1, 2] : vector<1x8x1024xf32> to vector<1xf32>
    %9 = vector.shape_cast %8 : vector<1xf32> to vector<1x1x1xf32>
    %10 = vector.extract %9[0, 0, 0] : f32 from vector<1x1x1xf32>
    %11 = arith.mulf %6, %6 : vector<8x1024xf32>
    %12 = vector.shape_cast %11 : vector<8x1024xf32> to vector<1x8x1024xf32>
    %cst_7 = arith.constant dense<0.000000e+00> : vector<1xf32>
    %13 = vector.multi_reduction <add>, %12, %cst_7 [1, 2] : vector<1x8x1024xf32> to vector<1xf32>
    %14 = vector.shape_cast %13 : vector<1xf32> to vector<1x1x1xf32>
    %15 = vector.extract %14[0, 0, 0] : f32 from vector<1x1x1xf32>
    %cst_8 = arith.constant 8.192000e+03 : f32
    %16 = arith.divf %10, %cst_8 : f32
    %cst_9 = arith.constant 8.192000e+03 : f32
    %17 = arith.divf %15, %cst_9 : f32
    %18 = arith.mulf %16, %16 : f32
    %19 = arith.subf %17, %18 : f32
    %cst_10 = arith.constant 9.99999974E-6 : f32
    %20 = arith.addf %19, %cst_10 : f32
    %21 = math.rsqrt %20 : f32
    %c0_11 = arith.constant 0 : index
    %c0_12 = arith.constant 0 : index
    %22 = vector.load %arg4[%c0_11, %c0_12] : memref<8x1xf32, #tpu.memory_space<vmem>>, vector<8x1xf32>
    %23 = vector.broadcast %21 : f32 to vector<8x1xf32>
    %24 = arith.mulf %22, %23 : vector<8x1xf32>
    %c0_13 = arith.constant 0 : index
    %c0_14 = arith.constant 0 : index
    %25 = vector.load %arg5[%c0_13, %c0_14] : memref<8x1xf32, #tpu.memory_space<vmem>>, vector<8x1xf32>
    %26 = vector.broadcast %16 : f32 to vector<8x1xf32>
    %27 = arith.mulf %26, %24 : vector<8x1xf32>
    %28 = arith.subf %25, %27 : vector<8x1xf32>
    %29 = vector.broadcast %24 : vector<8x1xf32> to vector<8x1024xf32>
    %30 = arith.mulf %6, %29 : vector<8x1024xf32>
    %31 = vector.broadcast %28 : vector<8x1xf32> to vector<8x1024xf32>
    %32 = arith.addf %30, %31 : vector<8x1024xf32>
    %cst_15 = arith.constant 0.000000e+00 : f32
    %33 = vector.broadcast %cst_15 : f32 to vector<8x1024xf32>
    %34 = arith.maximumf %32, %33 : vector<8x1024xf32>
    %cst_16 = arith.constant dense<0.000000e+00> : vector<8xf32>
    %35 = vector.multi_reduction <add>, %34, %cst_16 [1] : vector<8x1024xf32> to vector<8xf32>
    %36 = vector.shape_cast %35 : vector<8xf32> to vector<8x1xf32>
    %cst_17 = arith.constant 1.024000e+03 : f32
    %37 = vector.broadcast %cst_17 : f32 to vector<8x1xf32>
    %38 = arith.divf %36, %37 : vector<8x1xf32>
    %c0_18 = arith.constant 0 : index
    %c0_19 = arith.constant 0 : index
    %39 = vector.load %arg6[%c0_18, %c0_19] : memref<8x2xf32, #tpu.memory_space<vmem>>, vector<8x2xf32>
    %40 = vector.broadcast %38 : vector<8x1xf32> to vector<8x2xf32>
    %41 = arith.mulf %40, %39 : vector<8x2xf32>
    %cst_20 = arith.constant dense<0.000000e+00> : vector<2xf32>
    %42 = vector.multi_reduction <add>, %41, %cst_20 [0] : vector<8x2xf32> to vector<2xf32>
    %43 = vector.shape_cast %42 : vector<2xf32> to vector<1x2xf32>
    %c0_21 = arith.constant 0 : index
    %c0_22 = arith.constant 0 : index
    %44 = vector.load %arg7[%c0_21, %c0_22] : memref<1x2xf32, #tpu.memory_space<vmem>>, vector<1x2xf32>
    %45 = arith.addf %43, %44 : vector<1x2xf32>
    %cst_23 = arith.constant 0.000000e+00 : f32
    %46 = vector.broadcast %cst_23 : f32 to vector<1x2xf32>
    %47 = arith.maximumf %45, %46 : vector<1x2xf32>
    %c0_24 = arith.constant 0 : index
    %c0_25 = arith.constant 0 : index
    %48 = vector.load %arg8[%c0_24, %c0_25] : memref<8x2xf32, #tpu.memory_space<vmem>>, vector<8x2xf32>
    %49 = vector.broadcast %47 : vector<1x2xf32> to vector<8x2xf32>
    %50 = arith.mulf %48, %49 : vector<8x2xf32>
    %cst_26 = arith.constant dense<0.000000e+00> : vector<8xf32>
    %51 = vector.multi_reduction <add>, %50, %cst_26 [1] : vector<8x2xf32> to vector<8xf32>
    %52 = vector.shape_cast %51 : vector<8xf32> to vector<8x1xf32>
    %c0_27 = arith.constant 0 : index
    %c0_28 = arith.constant 0 : index
    %53 = vector.load %arg9[%c0_27, %c0_28] : memref<8x1xf32, #tpu.memory_space<vmem>>, vector<8x1xf32>
    %54 = arith.addf %52, %53 : vector<8x1xf32>
    %55 = arith.negf %54 : vector<8x1xf32>
    %56 = math.exp %55 : vector<8x1xf32>
    %cst_29 = arith.constant 1.000000e+00 : f32
    %57 = vector.broadcast %cst_29 : f32 to vector<8x1xf32>
    %58 = arith.addf %57, %56 : vector<8x1xf32>
    %59 = arith.divf %57, %58 : vector<8x1xf32>
    %60 = vector.broadcast %59 : vector<8x1xf32> to vector<8x1024xf32>
    %61 = arith.mulf %34, %60 : vector<8x1024xf32>
    %c0_30 = arith.constant 0 : index
    %c0_31 = arith.constant 0 : index
    %c0_32 = arith.constant 0 : index
    %62 = vector.load %arg10[%c0_30, %c0_31, %c0_32] : memref<1x8x1024xf32, #tpu.memory_space<vmem>>, vector<1x8x1024xf32>
    %63 = vector.shape_cast %62 : vector<1x8x1024xf32> to vector<8x1024xf32>
    %64 = vector.shape_cast %61 : vector<8x1024xf32> to vector<1x8x1024xf32>
    tpu.vector_store %arg10[%c0_30, %c0_31, %c0_32], %64 {strides = array<i32>} : memref<1x8x1024xf32, #tpu.memory_space<vmem>>, vector<1x8x1024xf32>,
    return
  }
  func.func @transform_0(%arg0: i32) -> (i32, i32, i32) {
    %c0_i32 = arith.constant 0 : i32
    %c0_i32_0 = arith.constant 0 : i32
    %c0_i32_1 = arith.constant 0 : i32
    return %arg0, %c0_i32, %c0_i32_0 : i32, i32, i32
  }
  func.func @transform_1(%arg0: i32) -> (i32, i32) {
    %c0_i32 = arith.constant 0 : i32
    %c0_i32_0 = arith.constant 0 : i32
    %c0_i32_1 = arith.constant 0 : i32
    return %c0_i32, %c0_i32_0 : i32, i32
  }
  func.func @transform_2(%arg0: i32) -> (i32, i32) {
    %c0_i32 = arith.constant 0 : i32
    %c0_i32_0 = arith.constant 0 : i32
    %c0_i32_1 = arith.constant 0 : i32
    return %c0_i32, %c0_i32_0 : i32, i32
  }
  func.func @transform_3(%arg0: i32) -> (i32, i32) {
    %c0_i32 = arith.constant 0 : i32
    %c0_i32_0 = arith.constant 0 : i32
    %c0_i32_1 = arith.constant 0 : i32
    return %c0_i32, %c0_i32_0 : i32, i32
  }
  func.func @transform_4(%arg0: i32) -> (i32, i32) {
    %c0_i32 = arith.constant 0 : i32
    %c0_i32_0 = arith.constant 0 : i32
    %c0_i32_1 = arith.constant 0 : i32
    return %c0_i32, %c0_i32_0 : i32, i32
  }
  func.func @transform_5(%arg0: i32) -> (i32, i32) {
    %c0_i32 = arith.constant 0 : i32
    %c0_i32_0 = arith.constant 0 : i32
    %c0_i32_1 = arith.constant 0 : i32
    return %c0_i32, %c0_i32_0 : i32, i32
  }
  func.func @transform_6(%arg0: i32) -> (i32, i32) {
    %c0_i32 = arith.constant 0 : i32
    %c0_i32_0 = arith.constant 0 : i32
    %c0_i32_1 = arith.constant 0 : i32
    return %c0_i32, %c0_i32_0 : i32, i32
  }
  func.func @transform_7(%arg0: i32) -> (i32, i32) {
    %c0_i32 = arith.constant 0 : i32
    %c0_i32_0 = arith.constant 0 : i32
    %c0_i32_1 = arith.constant 0 : i32
    return %c0_i32, %c0_i32_0 : i32, i32
  }
  func.func @transform_8(%arg0: i32) -> (i32, i32) {
    %c0_i32 = arith.constant 0 : i32
    %c0_i32_0 = arith.constant 0 : i32
    %c0_i32_1 = arith.constant 0 : i32
    return %c0_i32, %c0_i32_0 : i32, i32
  }
  func.func @transform_9(%arg0: i32) -> (i32, i32, i32) {
    %c0_i32 = arith.constant 0 : i32
    %c0_i32_0 = arith.constant 0 : i32
    %c0_i32_1 = arith.constant 0 : i32
    return %arg0, %c0_i32, %c0_i32_0 : i32, i32, i32
  }
}

</mosaic_0001>

<llo_original>
// kernel: tpu_custom_call.1
$region0: #{tpu_custom_call.1}
  #allocation0 [shape = 'u32[]', space=smem, size = 0x4, offset = 0x4, fixed_abs, tag = 'smem constant byte address 0x4 - core index']
  #allocation1 [shape = 'u32[144,128]{1,0:T(1,128)}', space=vmem, size = 0x12000, scoped, tag = 'internal scratch']
  %s0 = inlined_call_operand.hbm [shape: bf16[2,64,1024], index: 0, kind: input, shape index: {}]
  %s1 = inlined_call_operand.vmem [shape: bf16[8,64], index: 1, kind: input, shape index: {}]
  %s2 = inlined_call_operand.vmem [shape: f32[8,1], index: 2, kind: input, shape index: {}]
  %s3 = inlined_call_operand.vmem [shape: f32[8,1], index: 3, kind: input, shape index: {}]
  %s4 = inlined_call_operand.vmem [shape: f32[8,1], index: 4, kind: input, shape index: {}]
  %s5 = inlined_call_operand.vmem [shape: f32[8,2], index: 5, kind: input, shape index: {}]
  %s6 = inlined_call_operand.vmem [shape: f32[1,2], index: 6, kind: input, shape index: {}]
  %s7 = inlined_call_operand.vmem [shape: f32[8,2], index: 7, kind: input, shape index: {}]
  %s8 = inlined_call_operand.vmem [shape: f32[8,1], index: 8, kind: input, shape index: {}]
  %s9 = inlined_call_operand.hbm [shape: f32[2,8,1024], index: 9, kind: output, shape index: {}]
  %s10 = sld [smem:[#allocation0]]
  $region73: #{tpu_custom_call.1} parent=0
    _
  %s12 = ssub.s32 1, %s10
  %s13 = scalar_select 0, %s12, %s10
  $region1: #{tpu_custom_call.1} parent=0
    #allocation2 [shape = 'u8[262144]{0}', space=vmem, size = 0x40000, scoped, tag = 'input window, operand 0']
    #allocation3 [shape = 's32[2]{0}', space=sflag, size = 0x8, scoped, tag = 'scoped memory for tpu_custom_call.1']
    #allocation4 [shape = 's32[2]{0}', space=sflag, size = 0x8, scoped, tag = 'scoped memory for tpu_custom_call.1']
    #allocation5 [shape = 'u8[65536]{0}', space=vmem, size = 0x10000, scoped, tag = 'output window, operand 0']
    %14 = vsyncpa [#allocation3], 0
    %s15 = scalar_lea.sflag [#allocation3], 1
    %16 = vsyncpa %s15, 0
    %17 = vsyncpa [#allocation4], 0
    %s18 = scalar_lea.sflag [#allocation4], 1
    %19 = vsyncpa %s18, 0
    loop: start=0, step=1, limit=4
    $region2: #{tpu_custom_call.1} parent=1 // loop_pre_header
      _
    $region3: #{tpu_custom_call.1} parent=1 // loop_header
      %s21 = sphi 0, %s25
      %p22 = scmp.ge.s32.totalorder %s21, 4
      %s31 = sphi 0, %s33
      %s34 = sphi 0, %s31
      %s35 = sphi 0, %s34
      %s51 = sphi 0, %s35
      %s55 = sphi 0, %s55
      %s57 = sphi 0, %s55
      %s58 = sphi 0, %s57
      %s72 = sphi 0, %s58
      %s76 = sphi 0, %s76
      %s78 = sphi 0, %s76
      %s79 = sphi 0, %s78
      %s93 = sphi 0, %s79
      %s97 = sphi 0, %s97
      %s99 = sphi 0, %s97
      %s100 = sphi 0, %s99
      %s114 = sphi 0, %s100
      %s118 = sphi 0, %s118
      %s120 = sphi 0, %s118
      %s121 = sphi 0, %s120
      %s135 = sphi 0, %s121
      %s139 = sphi 0, %s139
      %s141 = sphi 0, %s139
      %s142 = sphi 0, %s141
      %s156 = sphi 0, %s142
      %s160 = sphi 0, %s160
      %s162 = sphi 0, %s160
      %s163 = sphi 0, %s162
      %s177 = sphi 0, %s163
      %s181 = sphi 0, %s181
      %s183 = sphi 0, %s181
      %s184 = sphi 0, %s183
      %s198 = sphi 0, %s184
      %s202 = sphi 0, %s202
      %s204 = sphi 0, %s202
      %s205 = sphi 0, %s204
      %s219 = sphi 0, %s205
      %s225 = sphi 0, %s227
      %s228 = sphi 0, %s225
      %s229 = sphi 0, %s228
      %s245 = sphi 0, %s229
    $region4: #{tpu_custom_call.1} parent=1 // loop_header_branch
      %24 = sbr.rel (%p22) target = $region8
    $region5: #{tpu_custom_call.1} parent=1 // loop_body
      %s26 = ssub.s32 %s21, 1
      %s27 = ssub.s32 %s21, 2
      %s28 = sadd.s32 %s21, 1
      %s29 = ssub.s32 %s21, %s28
      %p30 = scmp.eq.s32.totalorder %s29, 0
      %s32 = sadd.s32 %s31, 1
      %s33 = scalar_select %p30, %s31, %s32
      %p36 = pneg %p30
      %p37 = scmp.eq.s32.totalorder %s21, 1
      %p38 = por %p36, %p37
      %p39 = scmp.ne.s32.totalorder %s31, %s34
      %p40 = scmp.eq.s32.totalorder %s21, 0
      %p41 = por %p39, %p40
      %p42 = scmp.ne.s32.totalorder %s31, %s34
      %p43 = scmp.eq.s32.totalorder %s26, 1
      %p44 = por %p42, %p43
      %p45 = scmp.ne.s32.totalorder %s34, %s35
      %p46 = scmp.eq.s32.totalorder %s26, 0
      %p47 = por %p45, %p46
      %p48 = scmp.ne.s32.totalorder %s34, %s35
      %p49 = scmp.eq.s32.totalorder %s27, 1
      %p50 = por %p48, %p49
      %p52 = scmp.ne.s32.totalorder %s35, %s51
      %p53 = scmp.eq.s32.totalorder %s27, 0
      %p54 = por %p52, %p53
      %s56 = sadd.s32 %s55, 1
      %p59 = scmp.eq.s32.totalorder %s21, 1
      %p60 = scmp.ne.s32.totalorder %s55, %s57
      %p61 = scmp.eq.s32.totalorder %s21, 0
      %p62 = por %p60, %p61
      %p63 = scmp.ne.s32.totalorder %s55, %s57
      %p64 = scmp.eq.s32.totalorder %s26, 1
      %p65 = por %p63, %p64
      %p66 = scmp.ne.s32.totalorder %s57, %s58
      %p67 = scmp.eq.s32.totalorder %s26, 0
      %p68 = por %p66, %p67
      %p69 = scmp.ne.s32.totalorder %s57, %s58
      %p70 = scmp.eq.s32.totalorder %s27, 1
      %p71 = por %p69, %p70
      %p73 = scmp.ne.s32.totalorder %s58, %s72
      %p74 = scmp.eq.s32.totalorder %s27, 0
      %p75 = por %p73, %p74
      %s77 = sadd.s32 %s76, 1
      %p80 = scmp.eq.s32.totalorder %s21, 1
      %p81 = scmp.ne.s32.totalorder %s76, %s78
      %p82 = scmp.eq.s32.totalorder %s21, 0
      %p83 = por %p81, %p82
      %p84 = scmp.ne.s32.totalorder %s76, %s78
      %p85 = scmp.eq.s32.totalorder %s26, 1
      %p86 = por %p84, %p85
      %p87 = scmp.ne.s32.totalorder %s78, %s79
      %p88 = scmp.eq.s32.totalorder %s26, 0
      %p89 = por %p87, %p88
      %p90 = scmp.ne.s32.totalorder %s78, %s79
      %p91 = scmp.eq.s32.totalorder %s27, 1
      %p92 = por %p90, %p91
      %p94 = scmp.ne.s32.totalorder %s79, %s93
      %p95 = scmp.eq.s32.totalorder %s27, 0
      %p96 = por %p94, %p95
      %s98 = sadd.s32 %s97, 1
      %p101 = scmp.eq.s32.totalorder %s21, 1
      %p102 = scmp.ne.s32.totalorder %s97, %s99
      %p103 = scmp.eq.s32.totalorder %s21, 0
      %p104 = por %p102, %p103
      %p105 = scmp.ne.s32.totalorder %s97, %s99
      %p106 = scmp.eq.s32.totalorder %s26, 1
      %p107 = por %p105, %p106
      %p108 = scmp.ne.s32.totalorder %s99, %s100
      %p109 = scmp.eq.s32.totalorder %s26, 0
      %p110 = por %p108, %p109
      %p111 = scmp.ne.s32.totalorder %s99, %s100
      %p112 = scmp.eq.s32.totalorder %s27, 1
      %p113 = por %p111, %p112
      %p115 = scmp.ne.s32.totalorder %s100, %s114
      %p116 = scmp.eq.s32.totalorder %s27, 0
      %p117 = por %p115, %p116
      %s119 = sadd.s32 %s118, 1
      %p122 = scmp.eq.s32.totalorder %s21, 1
      %p123 = scmp.ne.s32.totalorder %s118, %s120
      %p124 = scmp.eq.s32.totalorder %s21, 0
      %p125 = por %p123, %p124
      %p126 = scmp.ne.s32.totalorder %s118, %s120
      %p127 = scmp.eq.s32.totalorder %s26, 1
      %p128 = por %p126, %p127
      %p129 = scmp.ne.s32.totalorder %s120, %s121
      %p130 = scmp.eq.s32.totalorder %s26, 0
      %p131 = por %p129, %p130
      %p132 = scmp.ne.s32.totalorder %s120, %s121
      %p133 = scmp.eq.s32.totalorder %s27, 1
      %p134 = por %p132, %p133
      %p136 = scmp.ne.s32.totalorder %s121, %s135
      %p137 = scmp.eq.s32.totalorder %s27, 0
      %p138 = por %p136, %p137
      %s140 = sadd.s32 %s139, 1
      %p143 = scmp.eq.s32.totalorder %s21, 1
      %p144 = scmp.ne.s32.totalorder %s139, %s141
      %p145 = scmp.eq.s32.totalorder %s21, 0
      %p146 = por %p144, %p145
      %p147 = scmp.ne.s32.totalorder %s139, %s141
      %p148 = scmp.eq.s32.totalorder %s26, 1
      %p149 = por %p147, %p148
      %p150 = scmp.ne.s32.totalorder %s141, %s142
      %p151 = scmp.eq.s32.totalorder %s26, 0
      %p152 = por %p150, %p151
      %p153 = scmp.ne.s32.totalorder %s141, %s142
      %p154 = scmp.eq.s32.totalorder %s27, 1
      %p155 = por %p153, %p154
      %p157 = scmp.ne.s32.totalorder %s142, %s156
      %p158 = scmp.eq.s32.totalorder %s27, 0
      %p159 = por %p157, %p158
      %s161 = sadd.s32 %s160, 1
      %p164 = scmp.eq.s32.totalorder %s21, 1
      %p165 = scmp.ne.s32.totalorder %s160, %s162
      %p166 = scmp.eq.s32.totalorder %s21, 0
      %p167 = por %p165, %p166
      %p168 = scmp.ne.s32.totalorder %s160, %s162
      %p169 = scmp.eq.s32.totalorder %s26, 1
      %p170 = por %p168, %p169
      %p171 = scmp.ne.s32.totalorder %s162, %s163
      %p172 = scmp.eq.s32.totalorder %s26, 0
      %p173 = por %p171, %p172
      %p174 = scmp.ne.s32.totalorder %s162, %s163
      %p175 = scmp.eq.s32.totalorder %s27, 1
      %p176 = por %p174, %p175
      %p178 = scmp.ne.s32.totalorder %s163, %s177
      %p179 = scmp.eq.s32.totalorder %s27, 0
      %p180 = por %p178, %p179
      %s182 = sadd.s32 %s181, 1
      %p185 = scmp.eq.s32.totalorder %s21, 1
      %p186 = scmp.ne.s32.totalorder %s181, %s183
      %p187 = scmp.eq.s32.totalorder %s21, 0
      %p188 = por %p186, %p187
      %p189 = scmp.ne.s32.totalorder %s181, %s183
      %p190 = scmp.eq.s32.totalorder %s26, 1
      %p191 = por %p189, %p190
      %p192 = scmp.ne.s32.totalorder %s183, %s184
      %p193 = scmp.eq.s32.totalorder %s26, 0
      %p194 = por %p192, %p193
      %p195 = scmp.ne.s32.totalorder %s183, %s184
      %p196 = scmp.eq.s32.totalorder %s27, 1
      %p197 = por %p195, %p196
      %p199 = scmp.ne.s32.totalorder %s184, %s198
      %p200 = scmp.eq.s32.totalorder %s27, 0
      %p201 = por %p199, %p200
      %s203 = sadd.s32 %s202, 1
      %p206 = scmp.eq.s32.totalorder %s21, 1
      %p207 = scmp.ne.s32.totalorder %s202, %s204
      %p208 = scmp.eq.s32.totalorder %s21, 0
      %p209 = por %p207, %p208
      %p210 = scmp.ne.s32.totalorder %s202, %s204
      %p211 = scmp.eq.s32.totalorder %s26, 1
      %p212 = por %p210, %p211
      %p213 = scmp.ne.s32.totalorder %s204, %s205
      %p214 = scmp.eq.s32.totalorder %s26, 0
      %p215 = por %p213, %p214
      %p216 = scmp.ne.s32.totalorder %s204, %s205
      %p217 = scmp.eq.s32.totalorder %s27, 1
      %p218 = por %p216, %p217
      %p220 = scmp.ne.s32.totalorder %s205, %s219
      %p221 = scmp.eq.s32.totalorder %s27, 0
      %p222 = por %p220, %p221
      %s223 = ssub.s32 %s21, %s28
      %p224 = scmp.eq.s32.totalorder %s223, 0
      %s226 = sadd.s32 %s225, 1
      %s227 = scalar_select %p224, %s225, %s226
      %p230 = pneg %p224
      %p231 = scmp.eq.s32.totalorder %s21, 1
      %p232 = por %p230, %p231
      %p233 = scmp.ne.s32.totalorder %s225, %s228
      %p234 = scmp.eq.s32.totalorder %s21, 0
      %p235 = por %p233, %p234
      %p236 = scmp.ne.s32.totalorder %s225, %s228
      %p237 = scmp.eq.s32.totalorder %s26, 1
      %p238 = por %p236, %p237
      %p239 = scmp.ne.s32.totalorder %s228, %s229
      %p240 = scmp.eq.s32.totalorder %s26, 0
      %p241 = por %p239, %p240
      %p242 = scmp.ne.s32.totalorder %s228, %s229
      %p243 = scmp.eq.s32.totalorder %s27, 1
      %p244 = por %p242, %p243
      %p246 = scmp.ne.s32.totalorder %s229, %s245
      %p247 = scmp.eq.s32.totalorder %s27, 0
      %p248 = por %p246, %p247
      %p249 = scmp.le.s32.totalorder 1, %s21
      %p250 = scmp.lt.s32.totalorder %s21, 3
      %p251 = pnand %p249, %p250
      %p252 = pneg %p251
      // Predicated region
      $region9: #{tpu_custom_call.1} parent=5 // pred_check
        _
      $region10: #{tpu_custom_call.1} parent=5 // pred_check_branch
        %254 = sbr.rel (%p251) target = $region12
      $region11: #{tpu_custom_call.1} parent=5 // pred_region
        %s255 = ssub.s32 %s21, 1
        // Predicated region
        $region13: #{tpu_custom_call.1} parent=11 // pred_check
          %p256 = pneg %p68
        $region14: #{tpu_custom_call.1} parent=11 // pred_check_branch
          %258 = sbr.rel (%p256) target = $region16
        $region15: #{tpu_custom_call.1} parent=11 // pred_region
          _
        $region16: #{tpu_custom_call.1} parent=11 // pred_fallthru
          _
        // Predicated region
        $region17: #{tpu_custom_call.1} parent=11 // pred_check
          %p259 = pneg %p89
        $region18: #{tpu_custom_call.1} parent=11 // pred_check_branch
          %261 = sbr.rel (%p259) target = $region20
        $region19: #{tpu_custom_call.1} parent=11 // pred_region
          _
        $region20: #{tpu_custom_call.1} parent=11 // pred_fallthru
          _
        // Predicated region
        $region21: #{tpu_custom_call.1} parent=11 // pred_check
          %p262 = pneg %p110
        $region22: #{tpu_custom_call.1} parent=11 // pred_check_branch
          %264 = sbr.rel (%p262) target = $region24
        $region23: #{tpu_custom_call.1} parent=11 // pred_region
          _
        $region24: #{tpu_custom_call.1} parent=11 // pred_fallthru
          _
        // Predicated region
        $region25: #{tpu_custom_call.1} parent=11 // pred_check
          %p265 = pneg %p131
        $region26: #{tpu_custom_call.1} parent=11 // pred_check_branch
          %267 = sbr.rel (%p265) target = $region28
        $region27: #{tpu_custom_call.1} parent=11 // pred_region
          _
        $region28: #{tpu_custom_call.1} parent=11 // pred_fallthru
          _
        // Predicated region
        $region29: #{tpu_custom_call.1} parent=11 // pred_check
          %p268 = pneg %p152
        $region30: #{tpu_custom_call.1} parent=11 // pred_check_branch
          %270 = sbr.rel (%p268) target = $region32
        $region31: #{tpu_custom_call.1} parent=11 // pred_region
          _
        $region32: #{tpu_custom_call.1} parent=11 // pred_fallthru
          _
        // Predicated region
        $region33: #{tpu_custom_call.1} parent=11 // pred_check
          %p271 = pneg %p173
        $region34: #{tpu_custom_call.1} parent=11 // pred_check_branch
          %273 = sbr.rel (%p271) target = $region36
        $region35: #{tpu_custom_call.1} parent=11 // pred_region
          _
        $region36: #{tpu_custom_call.1} parent=11 // pred_fallthru
          _
        // Predicated region
        $region37: #{tpu_custom_call.1} parent=11 // pred_check
          %p274 = pneg %p194
        $region38: #{tpu_custom_call.1} parent=11 // pred_check_branch
          %276 = sbr.rel (%p274) target = $region40
        $region39: #{tpu_custom_call.1} parent=11 // pred_region
          _
        $region40: #{tpu_custom_call.1} parent=11 // pred_fallthru
          _
        // Predicated region
        $region41: #{tpu_custom_call.1} parent=11 // pred_check
          %p277 = pneg %p215
        $region42: #{tpu_custom_call.1} parent=11 // pred_check_branch
          %279 = sbr.rel (%p277) target = $region44
        $region43: #{tpu_custom_call.1} parent=11 // pred_region
          _
        $region44: #{tpu_custom_call.1} parent=11 // pred_fallthru
          _
      $region12: #{tpu_custom_call.1} parent=5 // pred_fallthru
        _
      %p280 = scmp.lt.s32.totalorder %s21, 2
      // Predicated region
      $region45: #{tpu_custom_call.1} parent=5 // pred_check
        %p281 = pneg %p280
      $region46: #{tpu_custom_call.1} parent=5 // pred_check_branch
        %283 = sbr.rel (%p281) target = $region48
      $region47: #{tpu_custom_call.1} parent=5 // pred_region
        // Predicated region
        $region49: #{tpu_custom_call.1} parent=47 // pred_check
          %p284 = pneg %p41
        $region50: #{tpu_custom_call.1} parent=47 // pred_check_branch
          %286 = sbr.rel (%p284) target = $region52
        $region51: #{tpu_custom_call.1} parent=47 // pred_region
          %s287 = sand.u32 %s31, 1
          %s288 = scalar_lea.sflag [#allocation3], %s287
          %s289 = sand.u32 %s31, 1
          %s290 = smul.addr %s289, 256
          %s291 = scalar_lea.vmem [#allocation2], %s290
          %s293 = ssub.s32 4096, 4096
          %294 = vsyncadd %s288, %s293
          %s295 = smul.addr %s21, 64
          %s296 = smul.addr %s295, 64
          %s297 = scalar_lea.hbm %s0, %s296
          %s298 = sshll.u32 %s291, 4
          %s299 = int_to_ptr.vmem [resolvable:$true] %s298
          %304 = dma.hbm_to_vmem [thread:$0]  %s297, 4096, %s299, %s288, 512, 512, 32
        $region52: #{tpu_custom_call.1} parent=47 // pred_fallthru
          _
      $region48: #{tpu_custom_call.1} parent=5 // pred_fallthru
        _
      %p305 = scmp.le.s32.totalorder 1, %s21
      %p306 = scmp.lt.s32.totalorder %s21, 3
      %p307 = pnand %p305, %p306
      %p308 = pneg %p307
      // Predicated region
      $region53: #{tpu_custom_call.1} parent=5 // pred_check
        _
      $region54: #{tpu_custom_call.1} parent=5 // pred_check_branch
        %310 = sbr.rel (%p307) target = $region56
      $region55: #{tpu_custom_call.1} parent=5 // pred_region
        %s311 = ssub.s32 %s21, 1
        %s312 = sand.u32 %s34, 1
        %s313 = scalar_lea.sflag [#allocation3], %s312
        %s314 = sand.u32 %s34, 1
        %s315 = smul.addr %s314, 256
        %s316 = scalar_lea.vmem [#allocation2], %s315
        // Predicated region
        $region57: #{tpu_custom_call.1} parent=55 // pred_check
          %p317 = pneg %p47
        $region58: #{tpu_custom_call.1} parent=55 // pred_check_branch
          %319 = sbr.rel (%p317) target = $region60
        $region59: #{tpu_custom_call.1} parent=55 // pred_region
          %320 = dma.done %s313, 4096
        $region60: #{tpu_custom_call.1} parent=55 // pred_fallthru
          _
        %s321 = sand.u32 %s34, 1
        %s322 = scalar_lea.sflag [#allocation3], %s321
        %s323 = sand.u32 %s34, 1
        %s324 = smul.addr %s323, 256
        %s325 = scalar_lea.vmem [#allocation2], %s324
        %p326 = pneg %p47
        %p327 = pneg %p44
        %p328 = pneg %p68
        %p329 = pneg %p65
        %p330 = pneg %p89
        %p331 = pneg %p86
        %p332 = pneg %p110
        %p333 = pneg %p107
        %p334 = pneg %p131
        %p335 = pneg %p128
        %p336 = pneg %p152
        %p337 = pneg %p149
        %p338 = pneg %p173
        %p339 = pneg %p170
        %p340 = pneg %p194
        %p341 = pneg %p191
        %p342 = pneg %p215
        %p343 = pneg %p212
        %p344 = pneg %p241
        %p345 = pneg %p238
        %s346 = sand.u32 %s228, 1
        %s347 = scalar_lea.sflag [#allocation4], %s346
        %s348 = sand.u32 %s228, 1
        %s349 = smul.addr %s348, 64
        %s350 = scalar_lea.vmem [#allocation5], %s349
        %v352 = vld [vmem:[%s316] sm:$0xff]
        %v353 = vld [vmem:[%s316 + $0x8] sm:$0xff]
        %v354 = vld [vmem:[%s316 + $0x10] sm:$0xff]
        %v355 = vld [vmem:[%s316 + $0x18] sm:$0xff]
        %v356 = vld [vmem:[%s316 + $0x20] sm:$0xff]
        %v357 = vld [vmem:[%s316 + $0x28] sm:$0xff]
        %v358 = vld [vmem:[%s316 + $0x30] sm:$0xff]
        %v359 = vld [vmem:[%s316 + $0x38] sm:$0xff]
        %v360 = vld [vmem:[%s316 + $0x40] sm:$0xff]
        %v361 = vld [vmem:[%s316 + $0x48] sm:$0xff]
        %v362 = vld [vmem:[%s316 + $0x50] sm:$0xff]
        %v363 = vld [vmem:[%s316 + $0x58] sm:$0xff]
        %v364 = vld [vmem:[%s316 + $0x60] sm:$0xff]
        %v365 = vld [vmem:[%s316 + $0x68] sm:$0xff]
        %v366 = vld [vmem:[%s316 + $0x70] sm:$0xff]
        %v367 = vld [vmem:[%s316 + $0x78] sm:$0xff]
        %v368 = vld [vmem:[%s316 + $0x80] sm:$0xff]
        %v369 = vld [vmem:[%s316 + $0x88] sm:$0xff]
        %v370 = vld [vmem:[%s316 + $0x90] sm:$0xff]
        %v371 = vld [vmem:[%s316 + $0x98] sm:$0xff]
        %v372 = vld [vmem:[%s316 + $0xa0] sm:$0xff]
        %v373 = vld [vmem:[%s316 + $0xa8] sm:$0xff]
        %v374 = vld [vmem:[%s316 + $0xb0] sm:$0xff]
        %v375 = vld [vmem:[%s316 + $0xb8] sm:$0xff]
        %v376 = vld [vmem:[%s316 + $0xc0] sm:$0xff]
        %v377 = vld [vmem:[%s316 + $0xc8] sm:$0xff]
        %v378 = vld [vmem:[%s316 + $0xd0] sm:$0xff]
        %v379 = vld [vmem:[%s316 + $0xd8] sm:$0xff]
        %v380 = vld [vmem:[%s316 + $0xe0] sm:$0xff]
        %v381 = vld [vmem:[%s316 + $0xe8] sm:$0xff]
        %v382 = vld [vmem:[%s316 + $0xf0] sm:$0xff]
        %v383 = vld [vmem:[%s316 + $0xf8] sm:$0xff]
        %v384 = vld [vmem:[%s1] sm:$0xf]
        %v385 = vld [vmem:[%s2] sm:$0xff]
        %387 = vset.pattern.permute.xlu0 0
        %388 = vperm.xlu0 %387, %v385
        %v389 = vpop.permute.xlu0 %388
        %v423 = vunpack.c.l.b16 %v352
        %v424 = vunpack.c.h.b16 %v352
        %v425 = vunpack.c.l.b16 %v353
        %v426 = vunpack.c.h.b16 %v353
        %v427 = vunpack.c.l.b16 %v354
        %v428 = vunpack.c.h.b16 %v354
        %v429 = vunpack.c.l.b16 %v355
        %v430 = vunpack.c.h.b16 %v355
        %v431 = vunpack.c.l.b16 %v356
        %v432 = vunpack.c.h.b16 %v356
        %v433 = vunpack.c.l.b16 %v357
        %v434 = vunpack.c.h.b16 %v357
        %v435 = vunpack.c.l.b16 %v358
        %v436 = vunpack.c.h.b16 %v358
        %v437 = vunpack.c.l.b16 %v359
        %v438 = vunpack.c.h.b16 %v359
        %v439 = vunpack.c.l.b16 %v360
        %v440 = vunpack.c.h.b16 %v360
        %v441 = vunpack.c.l.b16 %v361
        %v442 = vunpack.c.h.b16 %v361
        %v443 = vunpack.c.l.b16 %v362
        %v444 = vunpack.c.h.b16 %v362
        %v445 = vunpack.c.l.b16 %v363
        %v446 = vunpack.c.h.b16 %v363
        %v447 = vunpack.c.l.b16 %v364
        %v448 = vunpack.c.h.b16 %v364
        %v449 = vunpack.c.l.b16 %v365
        %v450 = vunpack.c.h.b16 %v365
        %v451 = vunpack.c.l.b16 %v366
        %v452 = vunpack.c.h.b16 %v366
        %v453 = vunpack.c.l.b16 %v367
        %v454 = vunpack.c.h.b16 %v367
        %v455 = vunpack.c.l.b16 %v368
        %v456 = vunpack.c.h.b16 %v368
        %v457 = vunpack.c.l.b16 %v369
        %v458 = vunpack.c.h.b16 %v369
        %v459 = vunpack.c.l.b16 %v370
        %v460 = vunpack.c.h.b16 %v370
        %v461 = vunpack.c.l.b16 %v371
        %v462 = vunpack.c.h.b16 %v371
        %v463 = vunpack.c.l.b16 %v372
        %v464 = vunpack.c.h.b16 %v372
        %v465 = vunpack.c.l.b16 %v373
        %v466 = vunpack.c.h.b16 %v373
        %v467 = vunpack.c.l.b16 %v374
        %v468 = vunpack.c.h.b16 %v374
        %v469 = vunpack.c.l.b16 %v375
        %v470 = vunpack.c.h.b16 %v375
        %v471 = vunpack.c.l.b16 %v376
        %v472 = vunpack.c.h.b16 %v376
        %v473 = vunpack.c.l.b16 %v377
        %v474 = vunpack.c.h.b16 %v377
        %v475 = vunpack.c.l.b16 %v378
        %v476 = vunpack.c.h.b16 %v378
        %v477 = vunpack.c.l.b16 %v379
        %v478 = vunpack.c.h.b16 %v379
        %v479 = vunpack.c.l.b16 %v380
        %v480 = vunpack.c.h.b16 %v380
        %v481 = vunpack.c.l.b16 %v381
        %v482 = vunpack.c.h.b16 %v381
        %v483 = vunpack.c.l.b16 %v382
        %v484 = vunpack.c.h.b16 %v382
        %v485 = vunpack.c.l.b16 %v383
        %v486 = vunpack.c.h.b16 %v383
        %v487 = vpack.c.b16 %v431, %v423
        %v488 = vpack.c.b16 %v432, %v424
        %v489 = vpack.c.b16 %v433, %v425
        %v490 = vpack.c.b16 %v434, %v426
        %v491 = vpack.c.b16 %v435, %v427
        %v492 = vpack.c.b16 %v436, %v428
        %v493 = vpack.c.b16 %v437, %v429
        %v494 = vpack.c.b16 %v438, %v430
        %v495 = vpack.c.b16 %v447, %v439
        %v496 = vpack.c.b16 %v448, %v440
        %v497 = vpack.c.b16 %v449, %v441
        %v498 = vpack.c.b16 %v450, %v442
        %v499 = vpack.c.b16 %v451, %v443
        %v500 = vpack.c.b16 %v452, %v444
        %v501 = vpack.c.b16 %v453, %v445
        %v502 = vpack.c.b16 %v454, %v446
        %v503 = vpack.c.b16 %v463, %v455
        %v504 = vpack.c.b16 %v464, %v456
        %v505 = vpack.c.b16 %v465, %v457
        %v506 = vpack.c.b16 %v466, %v458
        %v507 = vpack.c.b16 %v467, %v459
        %v508 = vpack.c.b16 %v468, %v460
        %v509 = vpack.c.b16 %v469, %v461
        %v510 = vpack.c.b16 %v470, %v462
        %v511 = vpack.c.b16 %v479, %v471
        %v512 = vpack.c.b16 %v480, %v472
        %v513 = vpack.c.b16 %v481, %v473
        %v514 = vpack.c.b16 %v482, %v474
        %v515 = vpack.c.b16 %v483, %v475
        %v516 = vpack.c.b16 %v484, %v476
        %v517 = vpack.c.b16 %v485, %v477
        %v518 = vpack.c.b16 %v486, %v478
        %vm551 = vcmask 523264
        %v553 = vsel %vm551, %v384, 0
        %555 = vmatprep.subr.bf16.mxu0 0
        %556 = vmatpush1.bf16.msra.mxu0 0
        %557 = vmatprep.subr.bf16.mxu0 0
        %558 = vmatpush1.bf16.msra.mxu0 0
        %559 = vmatprep.subr.bf16.mxu0 0
        %560 = vmatpush1.bf16.msra.mxu0 0
        %561 = vmatprep.subr.bf16.mxu0 0
        %562 = vmatpush1.bf16.msra.mxu0 0
        %563 = vmatprep.subr.bf16.mxu0 %v512
        %564 = vmatpush1.bf16.msra.mxu0 %v511
        %565 = vmatprep.subr.bf16.mxu0 %v504
        %566 = vmatpush1.bf16.msra.mxu0 %v503
        %567 = vmatprep.subr.bf16.mxu0 %v496
        %568 = vmatpush1.bf16.msra.mxu0 %v495
        %569 = vmatprep.subr.bf16.mxu0 %v488
        %570 = vmatpush1.bf16.msra.mxu0 %v487
        %571 = vmatprep.subr.bf16.mxu0 0
        %572 = vmatpush2.bf16.msra.mxu0 0
        %573 = vmatprep.subr.bf16.mxu0 0
        %574 = vmatpush2.bf16.msra.mxu0 0
        %575 = vmatprep.subr.bf16.mxu0 0
        %576 = vmatpush2.bf16.msra.mxu0 0
        %577 = vmatprep.subr.bf16.mxu0 0
        %578 = vmatpush2.bf16.msra.mxu0 0
        %579 = vmatprep.subr.bf16.mxu0 0
        %580 = vmatpush2.bf16.msra.mxu0 0
        %581 = vmatprep.subr.bf16.mxu0 0
        %582 = vmatpush2.bf16.msra.mxu0 0
        %583 = vmatprep.subr.bf16.mxu0 0
        %584 = vmatpush2.bf16.msra.mxu0 0
        %585 = vmatprep.subr.bf16.mxu0 0
        %586 = vmatpush2.bf16.msra.mxu0 0
        %587 = vmatprep.mubr.bf16.mxu0 0
        %588 = vmatmul.mubr.bf16.gmra.mxu0 %v553
        %v589 = vpop.f32.mrf.mxu0
        %v590 = vadd.f32 %v389, %v589
        %v591 = vpop.f32.mrf.mxu0
        %v592 = vadd.f32 %v389, %v591
        %v593 = vpop.f32.mrf.mxu0
        %v594 = vpop.f32.mrf.mxu0
        %595 = vdwg.mxu0
        %596 = vmatprep.subr.bf16.mxu0 0
        %597 = vmatpush1.bf16.msra.mxu0 0
        %598 = vmatprep.subr.bf16.mxu0 0
        %599 = vmatpush1.bf16.msra.mxu0 0
        %600 = vmatprep.subr.bf16.mxu0 0
        %601 = vmatpush1.bf16.msra.mxu0 0
        %602 = vmatprep.subr.bf16.mxu0 0
        %603 = vmatpush1.bf16.msra.mxu0 0
        %604 = vmatprep.subr.bf16.mxu0 %v514
        %605 = vmatpush1.bf16.msra.mxu0 %v513
        %606 = vmatprep.subr.bf16.mxu0 %v506
        %607 = vmatpush1.bf16.msra.mxu0 %v505
        %608 = vmatprep.subr.bf16.mxu0 %v498
        %609 = vmatpush1.bf16.msra.mxu0 %v497
        %610 = vmatprep.subr.bf16.mxu0 %v490
        %611 = vmatpush1.bf16.msra.mxu0 %v489
        %612 = vmatprep.subr.bf16.mxu0 0
        %613 = vmatpush2.bf16.msra.mxu0 0
        %614 = vmatprep.subr.bf16.mxu0 0
        %615 = vmatpush2.bf16.msra.mxu0 0
        %616 = vmatprep.subr.bf16.mxu0 0
        %617 = vmatpush2.bf16.msra.mxu0 0
        %618 = vmatprep.subr.bf16.mxu0 0
        %619 = vmatpush2.bf16.msra.mxu0 0
        %620 = vmatprep.subr.bf16.mxu0 0
        %621 = vmatpush2.bf16.msra.mxu0 0
        %622 = vmatprep.subr.bf16.mxu0 0
        %623 = vmatpush2.bf16.msra.mxu0 0
        %624 = vmatprep.subr.bf16.mxu0 0
        %625 = vmatpush2.bf16.msra.mxu0 0
        %626 = vmatprep.subr.bf16.mxu0 0
        %627 = vmatpush2.bf16.msra.mxu0 0
        %628 = vmatprep.mubr.bf16.mxu0 0
        %629 = vmatmul.mubr.bf16.gmra.mxu0 %v553
        %v630 = vpop.f32.mrf.mxu0
        %v631 = vadd.f32 %v389, %v630
        %v632 = vpop.f32.mrf.mxu0
        %v633 = vadd.f32 %v389, %v632
        %v634 = vpop.f32.mrf.mxu0
        %v635 = vpop.f32.mrf.mxu0
        %636 = vdwg.mxu0
        %637 = vmatprep.subr.bf16.mxu0 0
        %638 = vmatpush1.bf16.msra.mxu0 0
        %639 = vmatprep.subr.bf16.mxu0 0
        %640 = vmatpush1.bf16.msra.mxu0 0
        %641 = vmatprep.subr.bf16.mxu0 0
        %642 = vmatpush1.bf16.msra.mxu0 0
        %643 = vmatprep.subr.bf16.mxu0 0
        %644 = vmatpush1.bf16.msra.mxu0 0
        %645 = vmatprep.subr.bf16.mxu0 %v516
        %646 = vmatpush1.bf16.msra.mxu0 %v515
        %647 = vmatprep.subr.bf16.mxu0 %v508
        %648 = vmatpush1.bf16.msra.mxu0 %v507
        %649 = vmatprep.subr.bf16.mxu0 %v500
        %650 = vmatpush1.bf16.msra.mxu0 %v499
        %651 = vmatprep.subr.bf16.mxu0 %v492
        %652 = vmatpush1.bf16.msra.mxu0 %v491
        %653 = vmatprep.subr.bf16.mxu0 0
        %654 = vmatpush2.bf16.msra.mxu0 0
        %655 = vmatprep.subr.bf16.mxu0 0
        %656 = vmatpush2.bf16.msra.mxu0 0
        %657 = vmatprep.subr.bf16.mxu0 0
        %658 = vmatpush2.bf16.msra.mxu0 0
        %659 = vmatprep.subr.bf16.mxu0 0
        %660 = vmatpush2.bf16.msra.mxu0 0
        %661 = vmatprep.subr.bf16.mxu0 0
        %662 = vmatpush2.bf16.msra.mxu0 0
        %663 = vmatprep.subr.bf16.mxu0 0
        %664 = vmatpush2.bf16.msra.mxu0 0
        %665 = vmatprep.subr.bf16.mxu0 0
        %666 = vmatpush2.bf16.msra.mxu0 0
        %667 = vmatprep.subr.bf16.mxu0 0
        %668 = vmatpush2.bf16.msra.mxu0 0
        %669 = vmatprep.mubr.bf16.mxu0 0
        %670 = vmatmul.mubr.bf16.gmra.mxu0 %v553
        %v671 = vpop.f32.mrf.mxu0
        %v672 = vadd.f32 %v389, %v671
        %v673 = vpop.f32.mrf.mxu0
        %v674 = vadd.f32 %v389, %v673
        %v675 = vpop.f32.mrf.mxu0
        %v676 = vpop.f32.mrf.mxu0
        %677 = vdwg.mxu0
        %678 = vmatprep.subr.bf16.mxu0 0
        %679 = vmatpush1.bf16.msra.mxu0 0
        %680 = vmatprep.subr.bf16.mxu0 0
        %681 = vmatpush1.bf16.msra.mxu0 0
        %682 = vmatprep.subr.bf16.mxu0 0
        %683 = vmatpush1.bf16.msra.mxu0 0
        %684 = vmatprep.subr.bf16.mxu0 0
        %685 = vmatpush1.bf16.msra.mxu0 0
        %686 = vmatprep.subr.bf16.mxu0 %v518
        %687 = vmatpush1.bf16.msra.mxu0 %v517
        %688 = vmatprep.subr.bf16.mxu0 %v510
        %689 = vmatpush1.bf16.msra.mxu0 %v509
        %690 = vmatprep.subr.bf16.mxu0 %v502
        %691 = vmatpush1.bf16.msra.mxu0 %v501
        %692 = vmatprep.subr.bf16.mxu0 %v494
        %693 = vmatpush1.bf16.msra.mxu0 %v493
        %694 = vmatprep.subr.bf16.mxu0 0
        %695 = vmatpush2.bf16.msra.mxu0 0
        %696 = vmatprep.subr.bf16.mxu0 0
        %697 = vmatpush2.bf16.msra.mxu0 0
        %698 = vmatprep.subr.bf16.mxu0 0
        %699 = vmatpush2.bf16.msra.mxu0 0
        %700 = vmatprep.subr.bf16.mxu0 0
        %701 = vmatpush2.bf16.msra.mxu0 0
        %702 = vmatprep.subr.bf16.mxu0 0
        %703 = vmatpush2.bf16.msra.mxu0 0
        %704 = vmatprep.subr.bf16.mxu0 0
        %705 = vmatpush2.bf16.msra.mxu0 0
        %706 = vmatprep.subr.bf16.mxu0 0
        %707 = vmatpush2.bf16.msra.mxu0 0
        %708 = vmatprep.subr.bf16.mxu0 0
        %709 = vmatpush2.bf16.msra.mxu0 0
        %710 = vmatprep.mubr.bf16.mxu0 0
        %711 = vmatmul.mubr.bf16.gmra.mxu0 %v553
        %v712 = vpop.f32.mrf.mxu0
        %v713 = vadd.f32 %v389, %v712
        %v714 = vpop.f32.mrf.mxu0
        %v715 = vadd.f32 %v389, %v714
        %v716 = vpop.f32.mrf.mxu0
        %v717 = vpop.f32.mrf.mxu0
        %718 = vdwg.mxu0
        %v719 = vadd.f32 %v590, %v592
        %v720 = vadd.f32 %v719, %v631
        %v721 = vadd.f32 %v720, %v633
        %v722 = vadd.f32 %v721, %v672
        %v723 = vadd.f32 %v722, %v674
        %v724 = vadd.f32 %v723, %v713
        %v725 = vadd.f32 %v724, %v715
        %726 = vadd.xlane.f32.xlu0 %v725
        %v727 = vpop.xlane.xlu0 %726
        %v728 = vrot.slane %v727, 4
        %v729 = vadd.f32 %v727, %v728
        %v730 = vrot.slane %v729, 2
        %v731 = vadd.f32 %v729, %v730
        %v732 = vrot.slane %v731, 1
        %v733 = vadd.f32 %v731, %v732
        %s734 = vtos %v733
        %v735 = vmul.f32 %v590, %v590
        %v736 = vmul.f32 %v592, %v592
        %v737 = vmul.f32 %v631, %v631
        %v738 = vmul.f32 %v633, %v633
        %v739 = vmul.f32 %v672, %v672
        %v740 = vmul.f32 %v674, %v674
        %v741 = vmul.f32 %v713, %v713
        %v742 = vmul.f32 %v715, %v715
        %v743 = vadd.f32 %v735, %v736
        %v744 = vadd.f32 %v743, %v737
        %v745 = vadd.f32 %v744, %v738
        %v746 = vadd.f32 %v745, %v739
        %v747 = vadd.f32 %v746, %v740
        %v748 = vadd.f32 %v747, %v741
        %v749 = vadd.f32 %v748, %v742
        %750 = vadd.xlane.f32.xlu0 %v749
        %v751 = vpop.xlane.xlu0 %750
        %v752 = vrot.slane %v751, 4
        %v753 = vadd.f32 %v751, %v752
        %v754 = vrot.slane %v753, 2
        %v755 = vadd.f32 %v753, %v754
        %v756 = vrot.slane %v755, 1
        %v757 = vadd.f32 %v755, %v756
        %s758 = vtos %v757
        %v759 = vrcp.pop 8192.0
        %s760 = vtos %v759
        %s761 = smul.f32 %s734, %s760
        %v762 = vrcp.pop 8192.0
        %s763 = vtos %v762
        %s764 = smul.f32 %s758, %s763
        %s765 = smul.f32 %s761, %s761
        %s766 = ssub.f32 %s764, %s765
        %s767 = sadd.f32 %s766, 1e-05
        %v768 = vstv %s767
        %v769 = vrsqrt.pop %v768
        %s770 = vtos %v769
        %v771 = vld [vmem:[%s3] sm:$0xff]
        %v772 = vstv %s770
        %v773 = vmul.f32 %v771, %v772
        %v774 = vld [vmem:[%s4] sm:$0xff]
        %v775 = vstv %s761
        %v776 = vmul.f32 %v775, %v773
        %v777 = vsub.f32 %v774, %v776
        %779 = vset.pattern.permute.xlu0 0
        %780 = vperm.xlu0 %779, %v773
        %v781 = vpop.permute.xlu0 %780
        %v783 = vmul.f32 %v590, %v781
        %v784 = vmul.f32 %v592, %v781
        %v785 = vmul.f32 %v631, %v781
        %v786 = vmul.f32 %v633, %v781
        %v787 = vmul.f32 %v672, %v781
        %v788 = vmul.f32 %v674, %v781
        %v789 = vmul.f32 %v713, %v781
        %v790 = vmul.f32 %v715, %v781
        %792 = vset.pattern.permute.xlu0 0
        %793 = vperm.xlu0 %792, %v777
        %v794 = vpop.permute.xlu0 %793
        %v796 = vadd.f32 %v783, %v794
        %v797 = vadd.f32 %v784, %v794
        %v798 = vadd.f32 %v785, %v794
        %v799 = vadd.f32 %v786, %v794
        %v800 = vadd.f32 %v787, %v794
        %v801 = vadd.f32 %v788, %v794
        %v802 = vadd.f32 %v789, %v794
        %v803 = vadd.f32 %v790, %v794
        %v804 = vmax.f32 %v796, 0.0
        %v805 = vmax.f32 %v797, 0.0
        %v806 = vmax.f32 %v798, 0.0
        %v807 = vmax.f32 %v799, 0.0
        %v808 = vmax.f32 %v800, 0.0
        %v809 = vmax.f32 %v801, 0.0
        %v810 = vmax.f32 %v802, 0.0
        %v811 = vmax.f32 %v803, 0.0
        %v812 = vadd.f32 %v804, %v805
        %v813 = vadd.f32 %v812, %v806
        %v814 = vadd.f32 %v813, %v807
        %v815 = vadd.f32 %v814, %v808
        %v816 = vadd.f32 %v815, %v809
        %v817 = vadd.f32 %v816, %v810
        %v818 = vadd.f32 %v817, %v811
        %819 = vadd.xlane.f32.xlu0 %v818
        %v820 = vpop.xlane.xlu0 %819
        %v821 = vrcp.pop 1024.0
        %v822 = vmul.f32 %v820, %v821
        %v823 = vld [vmem:[%s5] sm:$0xff]
        %v824 = vmul.f32 %v822, %v823
        %vm825 = vcmask 15360
        %v826 = vsel %vm825, %v824, 0.0
        %v827 = vrot.slane %v826, 4
        %v828 = vadd.f32 %v826, %v827
        %v829 = vrot.slane %v828, 2
        %v830 = vadd.f32 %v828, %v829
        %v831 = vrot.slane %v830, 1
        %v832 = vadd.f32 %v830, %v831
        %v833 = vld [vmem:[%s6] sm:$0x1]
        %v834 = vadd.f32 %v832, %v833
        %v835 = vmax.f32 %v834, 0.0
        %v836 = vld [vmem:[%s7] sm:$0xff]
        %v837 = vlaneseq
        %v838 = vshrl.u32 %v837, 7
        %v839 = vsub.s32 0, %v838
        %v840 = vrot.slane %v835, %v839
        %v841 = vmul.f32 %v836, %v840
        %v842 = vsel %vm825, %v841, 0.0
        %843 = vadd.xlane.f32.xlu0 %v842
        %v844 = vpop.xlane.xlu0 %843
        %v845 = vld [vmem:[%s8] sm:$0xff]
        %v846 = vadd.f32 %v844, %v845
        %v847 = vxor.u32 %v846, 2147483648
        %v848 = vmul.f32 %v847, 1.442695
        %v849 = vpow.pop %v848
        %v850 = vadd.f32 %v849, 1.0
        %v851 = vrcp.pop %v850
        %v852 = vmul.f32 1.0, %v851
        %854 = vset.pattern.permute.xlu0 0
        %855 = vperm.xlu0 %854, %v852
        %v856 = vpop.permute.xlu0 %855
        %v858 = vmul.f32 %v804, %v856
        %v859 = vmul.f32 %v805, %v856
        %v860 = vmul.f32 %v806, %v856
        %v861 = vmul.f32 %v807, %v856
        %v862 = vmul.f32 %v808, %v856
        %v863 = vmul.f32 %v809, %v856
        %v864 = vmul.f32 %v810, %v856
        %v865 = vmul.f32 %v811, %v856
        %866 = vst [vmem:[%s350] sm:$0xff] %v858
        %867 = vst [vmem:[%s350 + $0x8] sm:$0xff] %v859
        %868 = vst [vmem:[%s350 + $0x10] sm:$0xff] %v860
        %869 = vst [vmem:[%s350 + $0x18] sm:$0xff] %v861
        %870 = vst [vmem:[%s350 + $0x20] sm:$0xff] %v862
        %871 = vst [vmem:[%s350 + $0x28] sm:$0xff] %v863
        %872 = vst [vmem:[%s350 + $0x30] sm:$0xff] %v864
        %873 = vst [vmem:[%s350 + $0x38] sm:$0xff] %v865
        %s874 = sand.u32 %s228, 1
        %s875 = scalar_lea.sflag [#allocation4], %s874
        %s876 = sand.u32 %s228, 1
        %s877 = smul.addr %s876, 64
        %s878 = scalar_lea.vmem [#allocation5], %s877
        // Predicated region
        $region61: #{tpu_custom_call.1} parent=55 // pred_check
          %p879 = pneg %p238
        $region62: #{tpu_custom_call.1} parent=55 // pred_check_branch
          %881 = sbr.rel (%p879) target = $region64
        $region63: #{tpu_custom_call.1} parent=55 // pred_region
          %s883 = ssub.s32 1024, 1024
          %884 = vsyncadd %s875, %s883
          %s885 = smul.addr %s26, 8
          %s886 = smul.addr %s885, 128
          %s887 = scalar_lea.hbm %s9, %s886
          %s889 = sshll.u32 %s878, 4
          %s890 = int_to_ptr.vmem [resolvable:$true] %s889
          %892 = dma.vmem_to_hbm [thread:$0]  %s890, 1024, %s887, %s875
        $region64: #{tpu_custom_call.1} parent=55 // pred_fallthru
          _
      $region56: #{tpu_custom_call.1} parent=5 // pred_fallthru
        _
      %p893 = scmp.le.s32.totalorder 2, %s21
      // Predicated region
      $region65: #{tpu_custom_call.1} parent=5 // pred_check
        %p894 = pneg %p893
      $region66: #{tpu_custom_call.1} parent=5 // pred_check_branch
        %896 = sbr.rel (%p894) target = $region68
      $region67: #{tpu_custom_call.1} parent=5 // pred_region
        %s897 = ssub.s32 %s21, 2
        // Predicated region
        $region69: #{tpu_custom_call.1} parent=67 // pred_check
          %p898 = pneg %p244
        $region70: #{tpu_custom_call.1} parent=67 // pred_check_branch
          %900 = sbr.rel (%p898) target = $region72
        $region71: #{tpu_custom_call.1} parent=67 // pred_region
          %s901 = sand.u32 %s229, 1
          %s902 = scalar_lea.sflag [#allocation4], %s901
          %s903 = sand.u32 %s229, 1
          %s904 = smul.addr %s903, 64
          %s905 = scalar_lea.vmem [#allocation5], %s904
          %906 = dma.done %s902, 1024
        $region72: #{tpu_custom_call.1} parent=67 // pred_fallthru
          _
      $region68: #{tpu_custom_call.1} parent=5 // pred_fallthru
        _
    $region6: #{tpu_custom_call.1} parent=1 // loop_footer
      %s25 = sadd.s32 1, %s21
    $region7: #{tpu_custom_call.1} parent=1 // loop_footer_branch
      %20 = sbr.rel target = $region3
    $region8: #{tpu_custom_call.1} parent=1 // loop_exit
      _
    %907 = vsyncpa [#allocation3], 1
    %s908 = scalar_lea.sflag [#allocation3], 1
    %909 = vsyncpa %s908, 1
    %910 = vsyncpa [#allocation4], 1
    %s911 = scalar_lea.sflag [#allocation4], 1
    %912 = vsyncpa %s911, 1

</llo_original>
